<compile_context>
chip_gen: v5e
topology: v5e:2x2
jax: 0.10.0
libtpu: 0.0.40
codegen_flags: <defaults>
</compile_context>

<pallas_src>
import functools
import math

import jax
import jax.numpy as jnp
from jax.experimental import pallas as pl
from jax.experimental.pallas import tpu as pltpu


# ----------------------------- kernels ------------------------------------ #

def _pe_add_kernel(x_ref, pe_ref, o_ref):
    # x_ref: (ts, B, D), pe_ref: (ts, 1, D) -> broadcast add over batch.
    o_ref[...] = x_ref[...] + pe_ref[...]


def _pe_add_dropout_kernel(x_ref, pe_ref, bits_ref, o_ref, *, threshold, inv_keep):
    # Inverted dropout: keep iff bits >= threshold (P(keep) ~= 1 - p),
    # scale kept values by 1/(1-p). Single compare + select + mul per element.
    y = x_ref[...] + pe_ref[...]
    keep = bits_ref[...] >= jnp.uint32(threshold)
    o_ref[...] = jnp.where(keep, y * jnp.asarray(inv_keep, y.dtype),
                           jnp.zeros_like(y))


# ----------------------------- parameter setup ----------------------------- #

def make_positional_table(d_model, max_len=5000, dtype=jnp.float32):
    """Deterministic sin/cos table, identical math to the PyTorch __init__."""
    position = jnp.arange(max_len, dtype=jnp.float32)[:, None]            # (L, 1)
    div_term = jnp.exp(
        jnp.arange(0, d_model, 2, dtype=jnp.float32) * (-math.log(10000.0) / d_model)
    )                                                                     # (D/2,)
    pe = jnp.zeros((max_len, d_model), dtype=jnp.float32)
    pe = pe.at[:, 0::2].set(jnp.sin(position * div_term))
    pe = pe.at[:, 1::2].set(jnp.cos(position * div_term))
    # pe.unsqueeze(0).transpose(0, 1) -> (max_len, 1, d_model)
    return pe[:, None, :].astype(dtype)


# ----------------------------- wrapper ------------------------------------- #

def _auto_seq_tile(S, B, D, itemsize, target_bytes=1 << 20):
    """Pick a seq tile so each x block is ~1 MiB (multiple of 8 rows)."""
    bytes_per_row = max(1, B * D * itemsize)
    rows = max(1, target_bytes // bytes_per_row)
    rows = max(8, (rows // 8) * 8)
    return int(min(S, rows))


def positional_encoding(x, pe, *, dropout_p=0.1, training=False, rng_key=None,
                        seq_tile=None):
    """x: (S, B, D); pe: (max_len, 1, D). Returns dropout(x + pe[:S])."""
    S, B, D = x.shape
    max_len = pe.shape[0]
    if S > max_len:
        raise ValueError(f"sequence length {S} exceeds max_len {max_len}")
    if pe.dtype != x.dtype:
        # One-time cast; prefer constructing the table in x.dtype up front.
        pe = pe.astype(x.dtype)

    ts = _auto_seq_tile(S, B, D, x.dtype.itemsize) if seq_tile is None \
        else int(min(seq_tile, S))
    grid = (pl.cdiv(S, ts),)

    x_spec = pl.BlockSpec((ts, B, D), lambda i: (i, 0, 0))
    # Window directly into the full (max_len, 1, D) table: block i covers the
    # same seq rows as the x block; no pre-kernel pe[:S] slice/copy needed.
    pe_spec = pl.BlockSpec((ts, 1, D), lambda i: (i, 0, 0))
    out_spec = pl.BlockSpec((ts, B, D), lambda i: (i, 0, 0))
    out_shape = jax.ShapeDtypeStruct((S, B, D), x.dtype)
    # TODO(synk): for small B / non-multiple-of-128 D, present a lane-dense
    # (S*B, D-padded) view to the out_spec to avoid masked partial stores.
    cparams = pltpu.CompilerParams(dimension_semantics=("parallel",))

    if training and dropout_p > 0.0:
        if rng_key is None:
            rng_key = jax.random.PRNGKey(0)
        # Draw the random bits with jax.random (reproducible, independent of
        # the chosen tile size) and threshold them inside the kernel.
        # TODO(synk): use the on-chip pltpu.prng_random_bits PRNG instead when
        # interpret-mode portability is not required (saves one HBM read).
        bits = jax.random.bits(rng_key, (S, B, D), dtype=jnp.uint32)
        threshold = min(int(round(float(dropout_p) * float(1 << 32))), (1 << 32) - 1)
        kernel = functools.partial(
            _pe_add_dropout_kernel,
            threshold=threshold,
            inv_keep=1.0 / (1.0 - float(dropout_p)),
        )
        grid_spec = pltpu.PrefetchScalarGridSpec(
            num_scalar_prefetch=0, grid=grid,
            in_specs=[x_spec, pe_spec,
                      pl.BlockSpec((ts, B, D), lambda i: (i, 0, 0))],
            out_specs=out_spec)
        return pl.pallas_call(
            kernel, out_shape=out_shape, grid_spec=grid_spec,
            compiler_params=cparams,
        )(x, pe, bits)
    else:
        # Eval mode: nn.Dropout is identity.
        grid_spec = pltpu.PrefetchScalarGridSpec(
            num_scalar_prefetch=0, grid=grid,
            in_specs=[x_spec, pe_spec], out_specs=out_spec)
        return pl.pallas_call(
            _pe_add_kernel, out_shape=out_shape, grid_spec=grid_spec,
            compiler_params=cparams,
        )(x, pe)


# ----------------------------- demo / test --------------------------------- #

if __name__ == "__main__":
    S, B, D = 8, 2, 32          # seq=8, batch=2, d_model=32
    MAX_LEN = 64                # small max_len for the demo table

    key = jax.random.PRNGKey(0)
    kx, kdrop = jax.random.split(key)
    x = jax.random.normal(kx, (S, B, D), dtype=jnp.float32)

    pe = make_positional_table(D, max_len=MAX_LEN, dtype=x.dtype)

    # Eval-mode forward (dropout == identity) — deterministic, checkable.
    out = positional_encoding(x, pe, dropout_p=0.1, training=False)
    out = jax.block_until_ready(out)

    ref = x + pe[:S]
    assert out.shape == (S, B, D) and out.dtype == x.dtype
    assert jnp.allclose(out, ref, atol=1e-6, rtol=1e-6)

    # Training-mode dropout path: every output element must be either 0
    # (dropped) or ref / (1 - p) (kept & rescaled).
    p = 0.1
    out_tr = positional_encoding(x, pe, dropout_p=p, training=True,
                                 rng_key=kdrop)
    out_tr = jax.block_until_ready(out_tr)
    expected_kept = ref * (1.0 / (1.0 - p))
    ok = jnp.logical_or(
        jnp.isclose(out_tr, 0.0, atol=1e-6),
        jnp.isclose(out_tr, expected_kept, atol=1e-5, rtol=1e-5),
    )
    assert bool(jnp.all(ok))

    print("KERNEL_OK")
</pallas_src>

<mosaic_0001>
module attributes {stable_mosaic.version = 11 : i64} {
  func.func @_pe_add_kernel(%arg0: i32, %arg1: memref<8x2x32xf32, #tpu.memory_space<vmem>>, %arg2: memref<8x1x32xf32, #tpu.memory_space<vmem>>, %arg3: memref<8x2x32xf32, #tpu.memory_space<vmem>>) attributes {dimension_semantics = [#tpu.dimension_semantics<parallel>], iteration_bounds = array<i64: 1>, scalar_prefetch = 0 : i64, scratch_operands = 0 : i64, tpu.core_type = #tpu.core_type<tc>, window_params = [{transform_indices = @transform_0, window_bounds = array<i64: 8, 2, 32>}, {transform_indices = @transform_1, window_bounds = array<i64: 8, 1, 32>}, {transform_indices = @transform_2, window_bounds = array<i64: 8, 2, 32>}]} {
    %c0 = arith.constant 0 : index
    %c0_0 = arith.constant 0 : index
    %c0_1 = arith.constant 0 : index
    %0 = vector.load %arg1[%c0, %c0_0, %c0_1] : memref<8x2x32xf32, #tpu.memory_space<vmem>>, vector<8x2x32xf32>
    %c0_2 = arith.constant 0 : index
    %c0_3 = arith.constant 0 : index
    %c0_4 = arith.constant 0 : index
    %1 = vector.load %arg2[%c0_2, %c0_3, %c0_4] : memref<8x1x32xf32, #tpu.memory_space<vmem>>, vector<8x1x32xf32>
    %2 = vector.broadcast %1 : vector<8x1x32xf32> to vector<8x2x32xf32>
    %3 = arith.addf %0, %2 : vector<8x2x32xf32>
    %c0_5 = arith.constant 0 : index
    %c0_6 = arith.constant 0 : index
    %c0_7 = arith.constant 0 : index
    %4 = vector.load %arg3[%c0_5, %c0_6, %c0_7] : memref<8x2x32xf32, #tpu.memory_space<vmem>>, vector<8x2x32xf32>
    tpu.vector_store %arg3[%c0_5, %c0_6, %c0_7], %3 {strides = array<i32>} : memref<8x2x32xf32, #tpu.memory_space<vmem>>, vector<8x2x32xf32>,
    return
  }
  func.func @transform_0(%arg0: i32) -> (i32, i32, i32) {
    %c0_i32 = arith.constant 0 : i32
    %c0_i32_0 = arith.constant 0 : i32
    %c0_i32_1 = arith.constant 0 : i32
    return %arg0, %c0_i32, %c0_i32_0 : i32, i32, i32
  }
  func.func @transform_1(%arg0: i32) -> (i32, i32, i32) {
    %c0_i32 = arith.constant 0 : i32
    %c0_i32_0 = arith.constant 0 : i32
    %c0_i32_1 = arith.constant 0 : i32
    return %arg0, %c0_i32, %c0_i32_0 : i32, i32, i32
  }
  func.func @transform_2(%arg0: i32) -> (i32, i32, i32) {
    %c0_i32 = arith.constant 0 : i32
    %c0_i32_0 = arith.constant 0 : i32
    %c0_i32_1 = arith.constant 0 : i32
    return %arg0, %c0_i32, %c0_i32_0 : i32, i32, i32
  }
}

</mosaic_0001>

<llo_original>
// kernel: tpu_custom_call.1
$region0: #{tpu_custom_call.1}
  #allocation0 [shape = 'u32[]', space=smem, size = 0x4, offset = 0x4, fixed_abs, tag = 'smem constant byte address 0x4 - core index']
  #allocation1 [shape = 'u32[72,128]{1,0:T(1,128)}', space=vmem, size = 0x9000, scoped, tag = 'internal scratch']
  %s0 = inlined_call_operand.vmem [shape: f32[8,2,32], index: 0, kind: input, shape index: {}]
  %s1 = inlined_call_operand.vmem [shape: f32[64,1,32], index: 1, kind: input, shape index: {}]
  %s2 = inlined_call_operand.hbm [shape: f32[8,2,32], index: 2, kind: output, shape index: {}]
  %s3 = sld [smem:[#allocation0]]
  $region18: #{tpu_custom_call.1} parent=0
    _
  %s5 = ssub.s32 1, %s3
  %s6 = scalar_select 0, %s5, %s3
  $region1: #{tpu_custom_call.1} parent=0
    #allocation2 [shape = 'u8[8192]{0}', space=vmem, size = 0x2000, scoped, tag = 'output window, operand 0, single buffered']
    #allocation3 [shape = 's32[1]{0}', space=sflag, size = 0x4, scoped, tag = 'scoped memory for tpu_custom_call.1']
    %7 = vsyncpa [#allocation3], 0
    // Predicated region
    $region2: #{tpu_custom_call.1} parent=1 // pred_check
      _
    $region3: #{tpu_custom_call.1} parent=1 // pred_check_branch
      %9 = sbr.rel (0) target = $region5
    $region4: #{tpu_custom_call.1} parent=1 // pred_region
      _
    $region5: #{tpu_custom_call.1} parent=1 // pred_fallthru
      _
    // Predicated region
    $region6: #{tpu_custom_call.1} parent=1 // pred_check
      _
    $region7: #{tpu_custom_call.1} parent=1 // pred_check_branch
      %11 = sbr.rel (0) target = $region9
    $region8: #{tpu_custom_call.1} parent=1 // pred_region
      _
    $region9: #{tpu_custom_call.1} parent=1 // pred_fallthru
      _
    %v12 = vld [vmem:[%s0] sm:$0x3]
    %v13 = vld [vmem:[%s0 + $0x2] sm:$0x3]
    %v14 = vld [vmem:[%s0 + $0x4] sm:$0x3]
    %v15 = vld [vmem:[%s0 + $0x6] sm:$0x3]
    %v16 = vld [vmem:[%s0 + $0x8] sm:$0x3]
    %v17 = vld [vmem:[%s0 + $0xa] sm:$0x3]
    %v18 = vld [vmem:[%s0 + $0xc] sm:$0x3]
    %v19 = vld [vmem:[%s0 + $0xe] sm:$0x3]
    %v20 = vld [vmem:[%s1] sm:$0x1]
    %v21 = vld [vmem:[%s1 + $0x1] sm:$0x1]
    %v22 = vld [vmem:[%s1 + $0x2] sm:$0x1]
    %v23 = vld [vmem:[%s1 + $0x3] sm:$0x1]
    %v24 = vld [vmem:[%s1 + $0x4] sm:$0x1]
    %v25 = vld [vmem:[%s1 + $0x5] sm:$0x1]
    %v26 = vld [vmem:[%s1 + $0x6] sm:$0x1]
    %v27 = vld [vmem:[%s1 + $0x7] sm:$0x1]
    %v36 = vperm.slane %v20, 0
    %v37 = vperm.slane %v21, 0
    %v38 = vperm.slane %v22, 0
    %v39 = vperm.slane %v23, 0
    %v40 = vperm.slane %v24, 0
    %v41 = vperm.slane %v25, 0
    %v42 = vperm.slane %v26, 0
    %v43 = vperm.slane %v27, 0
    %v52 = vadd.f32 %v12, %v36
    %v53 = vadd.f32 %v13, %v37
    %v54 = vadd.f32 %v14, %v38
    %v55 = vadd.f32 %v15, %v39
    %v56 = vadd.f32 %v16, %v40
    %v57 = vadd.f32 %v17, %v41
    %v58 = vadd.f32 %v18, %v42
    %v59 = vadd.f32 %v19, %v43
    %vm60 = vcmask 254976
    %61 = vst.msk [vmem:[#allocation2] sm:$0x3] %vm60, %v52
    %62 = vst.msk [vmem:[#allocation2 + $0x2] sm:$0x3] %vm60, %v53
    %63 = vst.msk [vmem:[#allocation2 + $0x4] sm:$0x3] %vm60, %v54
    %64 = vst.msk [vmem:[#allocation2 + $0x6] sm:$0x3] %vm60, %v55
    %65 = vst.msk [vmem:[#allocation2 + $0x8] sm:$0x3] %vm60, %v56
    %66 = vst.msk [vmem:[#allocation2 + $0xa] sm:$0x3] %vm60, %v57
    %67 = vst.msk [vmem:[#allocation2 + $0xc] sm:$0x3] %vm60, %v58
    %68 = vst.msk [vmem:[#allocation2 + $0xe] sm:$0x3] %vm60, %v59
    // Predicated region
    $region10: #{tpu_custom_call.1} parent=1 // pred_check
      _
    $region11: #{tpu_custom_call.1} parent=1 // pred_check_branch
      %70 = sbr.rel (0) target = $region13
    $region12: #{tpu_custom_call.1} parent=1 // pred_region
      %72 = vsyncadd [#allocation3], 0
      %s73 = sshll.u32 [#allocation2], 4
      %s74 = int_to_ptr.vmem [resolvable:$true] %s73
      %s75 = sshll.u32 %s2, 4
      %s76 = int_to_ptr.hbm [resolvable:$true] %s75
      %81 = dma.vmem_to_hbm [thread:$0]  %s74, 256, %s76, [#allocation3], 32, 32, 2
    $region13: #{tpu_custom_call.1} parent=1 // pred_fallthru
      _
    // Predicated region
    $region14: #{tpu_custom_call.1} parent=1 // pred_check
      _
    $region15: #{tpu_custom_call.1} parent=1 // pred_check_branch
      %83 = sbr.rel (0) target = $region17
    $region16: #{tpu_custom_call.1} parent=1 // pred_region
      %85 = dma.done [#allocation3], 256
    $region17: #{tpu_custom_call.1} parent=1 // pred_fallthru
      _
    %86 = vsyncpa [#allocation3], 1

</llo_original>
